<compile_context>
chip_gen: v7x
topology: tpu7x:2x2x1
jax: 0.10.0
libtpu: 0.0.40
codegen_flags: <defaults>
</compile_context>

<pallas_src>
import functools

import jax
import jax.numpy as jnp
from jax.experimental import pallas as pl
from jax.experimental.pallas import tpu as pltpu


def _bgl_kernel(gray_ref, pred_ref, mask_ref, out_ref,
                cg_ref, cp_ref, cm_ref, *, lamb, alpha, th, w):
    """One grid step = one (TH, W) row tile of one image.

    gray_ref, pred_ref, mask_ref : (1, TH, W) row tiles, native dtype.
    out_ref                      : (1, 1, 1) per-image running loss sum.
    cg_ref, cp_ref               : (2, W) f32 carry of the last two gray/pred
                                   rows of the previous tile (Sobel halo).
    cm_ref                       : (1, W) f32 carry of the previous tile's last
                                   mask row (its Sobel output is deferred here).
    """
    t = pl.program_id(1)
    n_t = pl.num_programs(1)

    @pl.when(t == 0)
    def _init():
        out_ref[...] = jnp.zeros_like(out_ref)
        cg_ref[...] = jnp.zeros_like(cg_ref)
        cp_ref[...] = jnp.zeros_like(cp_ref)
        cm_ref[...] = jnp.zeros_like(cm_ref)

    # Cast on first use (no wrapper-side f32 copies in HBM).
    g = gray_ref[0].astype(jnp.float32)   # (TH, W)
    p = pred_ref[0].astype(jnp.float32)
    m = mask_ref[0].astype(jnp.float32)

    # Carry-extended tiles: image rows [t*TH - 2, (t+1)*TH); zero halo at t==0.
    g_ext = jnp.concatenate([cg_ref[...], g], axis=0)   # (TH + 2, W)
    p_ext = jnp.concatenate([cp_ref[...], p], axis=0)

    # Column shifts along the lane axis.
    if w % 128 == 0:
        # XLU roll + VPU select on an iota edge mask (lane-dense fast path).
        col = jax.lax.broadcasted_iota(jnp.int32, (1, w), 1)
        left_edge = col == 0
        right_edge = col == w - 1

        def sh_r(a):   # a[:, j-1], zero at j == 0
            return jnp.where(left_edge, 0.0, pltpu.roll(a, shift=1, axis=1))

        def sh_l(a):   # a[:, j+1], zero at j == W-1
            return jnp.where(right_edge, 0.0, pltpu.roll(a, shift=w - 1, axis=1))
    else:
        # Unaligned-W fallback (e.g. tiny test images): explicit zero column.
        def sh_r(a):
            zc = jnp.zeros((a.shape[0], 1), jnp.float32)
            return jnp.concatenate([zc, a[:, :-1]], axis=1)

        def sh_l(a):
            zc = jnp.zeros((a.shape[0], 1), jnp.float32)
            return jnp.concatenate([a[:, 1:], zc], axis=1)

    def loss_sum(a_i, b_i, a_g, b_g, mrows):
        # Separable 3x3 Sobel cross-correlation with zero padding:
        #   kx = [[1,0,-1],[2,0,-2],[1,0,-1]] -> gx = A[j-1] - A[j+1], A = up+2*mid+dn
        #   ky = [[1,2,1],[0,0,0],[-1,-2,-1]] -> gy = B[j-1] + 2*B + B[j+1], B = up-dn
        i_x = sh_r(a_i) - sh_l(a_i)
        i_y = sh_r(b_i) + 2.0 * b_i + sh_l(b_i)
        g_x = sh_r(a_g) - sh_l(a_g)
        g_y = sh_r(b_g) + 2.0 * b_g + sh_l(b_g)
        i2 = i_x * i_x + i_y * i_y + 1e-6
        g2 = g_x * g_x + g_y * g_y + 1e-6
        inv_i = jax.lax.rsqrt(i2)         # EUP slot (replaces sqrt + divide)
        inv_g = jax.lax.rsqrt(g2)
        imag = i2 * inv_i                 # == sqrt(i2)
        gmag = g2 * inv_g                 # == sqrt(g2)
        cos = (i_x * g_x + i_y * g_y) * (inv_i * inv_g)
        lcos = (1.0 - jnp.abs(cos)) * gmag
        lmag = jnp.maximum(lamb * imag - gmag, 0.0)
        return jnp.sum((alpha * lcos + (1.0 - alpha) * lmag) * mrows)

    # ---- main TH outputs: image rows [t*TH - 1, (t+1)*TH - 1) ----------------
    up_g, mid_g, dn_g = g_ext[:th], g_ext[1:th + 1], g_ext[2:th + 2]
    up_p, mid_p, dn_p = p_ext[:th], p_ext[1:th + 1], p_ext[2:th + 2]
    a_i = up_g + 2.0 * mid_g + dn_g
    b_i = up_g - dn_g
    a_g = up_p + 2.0 * mid_p + dn_p
    b_g = up_p - dn_p
    # Mask rows for those outputs: row t*TH - 1 comes from the carry (it is 0
    # at t == 0, which also kills the spurious "row -1" Sobel output).
    if th > 1:
        m_rows = jnp.concatenate([cm_ref[...], m[:th - 1]], axis=0)   # (TH, W)
    else:
        m_rows = cm_ref[...]
    out_ref[...] += loss_sum(a_i, b_i, a_g, b_g, m_rows)

    # ---- last image row H-1 (zero halo below), only on the last row tile -----
    @pl.when(t == n_t - 1)
    def _last_row():
        upg, midg = g_ext[th:th + 1], g_ext[th + 1:th + 2]
        upp, midp = p_ext[th:th + 1], p_ext[th + 1:th + 2]
        out_ref[...] += loss_sum(upg + 2.0 * midg, upg,
                                 upp + 2.0 * midp, upp,
                                 m[th - 1:th])

    # ---- carry the last two rows (and last mask row) to the next row tile ----
    cg_ref[...] = g_ext[th:th + 2]
    cp_ref[...] = p_ext[th:th + 2]
    cm_ref[...] = m[th - 1:th]


def _choose_row_tile(h, w, target_tile_bytes=2 << 20):
    """Largest divisor of H that is a multiple of 16 (sublane-safe for f32/bf16)
    whose f32 row tile fits the per-array VMEM budget; falls back to full H."""
    max_rows = max(1, target_tile_bytes // max(1, 4 * w))
    if h <= max_rows:
        return h
    best = 0
    for d in range(16, int(max_rows) + 1, 16):
        if h % d == 0:
            best = d
    return best if best > 0 else h


def boundary_gradient_loss(gray_image, pred, mask, *, lamb=1.5, alpha=0.5,
                           reduction="mean", loss_weight=1.0, row_tile=None):
    """JAX/Pallas equivalent of BoundaryGradientLoss.forward.

    gray_image, pred, mask : (N, H, W).  Dtypes are preserved on the HBM side
    (pass bf16 images / int8 masks to cut HBM traffic, especially on v5e); all
    arithmetic is f32 inside the kernel.  If the producer pads W up to a
    multiple of 128 (recommended for lane-dense shifts), the mask must be zero
    in the padded region and `reduction='mean'` must divide by the ORIGINAL
    element count (pass reduction='sum' and divide outside in that case).
    """
    n, h, w = gray_image.shape
    assert pred.shape == (n, h, w) and mask.shape == (n, h, w)

    if row_tile is None:
        th = _choose_row_tile(h, w)
    else:
        assert h % row_tile == 0, "row_tile must divide H"
        th = int(row_tile)
    n_tiles = h // th

    kernel = functools.partial(_bgl_kernel, lamb=float(lamb), alpha=float(alpha),
                               th=th, w=w)

    bytes_in = (jnp.dtype(gray_image.dtype).itemsize
                + jnp.dtype(pred.dtype).itemsize
                + jnp.dtype(mask.dtype).itemsize) * n * h * w
    cost = pl.CostEstimate(flops=40 * n * h * w,
                           transcendentals=2 * n * h * w,
                           bytes_accessed=bytes_in + 4 * n)

    partial_sums = pl.pallas_call(
        kernel,
        out_shape=jax.ShapeDtypeStruct((n, 1, 1), jnp.float32),
        grid_spec=pltpu.PrefetchScalarGridSpec(
            num_scalar_prefetch=0,
            grid=(n, n_tiles),
            in_specs=[
                pl.BlockSpec((1, th, w), lambda b, t: (b, t, 0)),
                pl.BlockSpec((1, th, w), lambda b, t: (b, t, 0)),
                pl.BlockSpec((1, th, w), lambda b, t: (b, t, 0)),
            ],
            out_specs=pl.BlockSpec((1, 1, 1), lambda b, t: (b, 0, 0)),
            scratch_shapes=[
                pltpu.VMEM((2, w), jnp.float32),   # gray halo carry
                pltpu.VMEM((2, w), jnp.float32),   # pred halo carry
                pltpu.VMEM((1, w), jnp.float32),   # mask row carry
            ],
        ),
        compiler_params=pltpu.CompilerParams(
            dimension_semantics=("parallel", "arbitrary"),
            vmem_limit_bytes=48 * 1024 * 1024,     # fits v7x's 64 MiB physical VMEM
        ),
        cost_estimate=cost,
    )(gray_image, pred, mask)

    total = jnp.sum(partial_sums)
    if reduction == "mean":
        loss = total / jnp.float32(n * h * w)
    elif reduction == "sum":
        loss = total
    else:
        # TODO(synk): reduction='none' would need the full (N,1,H,W) loss-map output.
        raise NotImplementedError("only 'mean' and 'sum' reductions supported")
    return loss * jnp.float32(loss_weight)


def _reference_loss(gray_image, pred, mask, *, lamb=1.5, alpha=0.5,
                    reduction="mean", loss_weight=1.0):
    """Pure-JAX reference mirroring the PyTorch code (uses real conv2d)."""
    kx = jnp.array([[1., 0., -1.], [2., 0., -2.], [1., 0., -1.]],
                   jnp.float32).reshape(1, 1, 3, 3)
    ky = jnp.array([[1., 2., 1.], [0., 0., 0.], [-1., -2., -1.]],
                   jnp.float32).reshape(1, 1, 3, 3)
    g = gray_image[:, None].astype(jnp.float32)
    p = pred[:, None].astype(jnp.float32)

    def conv(x, wgt):
        return jax.lax.conv_general_dilated(
            x, wgt, (1, 1), ((1, 1), (1, 1)),
            dimension_numbers=("NCHW", "OIHW", "NCHW"),
            precision=jax.lax.Precision.HIGHEST)

    I_x, G_x = conv(g, kx), conv(p, kx)
    I_y, G_y = conv(g, ky), conv(p, ky)
    I = jnp.sqrt(I_x ** 2 + I_y ** 2 + 1e-6)
    G = jnp.sqrt(G_x ** 2 + G_y ** 2 + 1e-6)
    Lcos = (1 - jnp.abs((I_x / I) * (G_x / G) + (I_y / I) * (G_y / G))) * G
    Lmag = jnp.maximum(lamb * I - G, 0.0)
    loss = (alpha * Lcos + (1 - alpha) * Lmag) * mask[:, None].astype(jnp.float32)
    loss = loss.mean() if reduction == "mean" else loss.sum()
    return loss * loss_weight


if __name__ == "__main__":
    key = jax.random.PRNGKey(0)

    def run_case(n, h, w, row_tile=None):
        k1, k2, k3 = jax.random.split(jax.random.fold_in(key, h * 1000 + w), 3)
        gray = jax.random.uniform(k1, (n, h, w), jnp.float32)          # in [0, 1]
        pred = jax.random.uniform(k2, (n, h, w), jnp.float32)
        mask = (jax.random.uniform(k3, (n, h, w)) > 0.5).astype(jnp.float32)
        out = boundary_gradient_loss(gray, pred, mask, lamb=1.5, alpha=0.5,
                                     reduction="mean", loss_weight=1.0,
                                     row_tile=row_tile)
        out = jax.block_until_ready(out)
        ref = jax.block_until_ready(_reference_loss(gray, pred, mask))
        # Small slack for EUP rsqrt rounding vs. the division-based reference.
        assert jnp.allclose(out, ref, rtol=1e-3, atol=1e-5), \
            (n, h, w, row_tile, out, ref)

    # Tiny image, single row tile, unaligned W (concatenate column-shift path).
    run_case(2, 16, 16)
    # Lane-aligned W with multiple row tiles: exercises the carry + roll path.
    run_case(2, 16, 128, row_tile=8)

    print("KERNEL_OK")
</pallas_src>

<mosaic_0001>
module attributes {stable_mosaic.version = 11 : i64} {
  func.func @_bgl_kernel(%arg0: i32, %arg1: i32, %arg2: memref<1x16x16xf32, #tpu.memory_space<vmem>>, %arg3: memref<1x16x16xf32, #tpu.memory_space<vmem>>, %arg4: memref<1x16x16xf32, #tpu.memory_space<vmem>>, %arg5: memref<1x1x1xf32, #tpu.memory_space<vmem>>, %arg6: memref<2x16xf32, #tpu.memory_space<vmem>>, %arg7: memref<2x16xf32, #tpu.memory_space<vmem>>, %arg8: memref<1x16xf32, #tpu.memory_space<vmem>>) attributes {dimension_semantics = [#tpu.dimension_semantics<parallel>, #tpu.dimension_semantics<arbitrary>], iteration_bounds = array<i64: 2, 1>, scalar_prefetch = 0 : i64, scratch_operands = 3 : i64, tpu.core_type = #tpu.core_type<tc>, window_params = [{transform_indices = @transform_0, window_bounds = array<i64: 1, 16, 16>}, {transform_indices = @transform_1, window_bounds = array<i64: 1, 16, 16>}, {transform_indices = @transform_2, window_bounds = array<i64: 1, 16, 16>}, {transform_indices = @transform_3, window_bounds = array<i64: 1, 1, 1>}]} {
    %c0_i32 = arith.constant 0 : i32
    %0 = arith.cmpi eq, %arg1, %c0_i32 : i32
    %1 = arith.extui %0 : i1 to i32
    %c0_i32_0 = arith.constant 0 : i32
    %2 = arith.cmpi ne, %1, %c0_i32_0 : i32
    scf.if %2 {
      %cst_48 = arith.constant 0.000000e+00 : f32
      %117 = vector.broadcast %cst_48 : f32 to vector<1x1x1xf32>
      %c0_49 = arith.constant 0 : index
      %c0_50 = arith.constant 0 : index
      %c0_51 = arith.constant 0 : index
      %118 = vector.load %arg5[%c0_49, %c0_50, %c0_51] : memref<1x1x1xf32, #tpu.memory_space<vmem>>, vector<1x1x1xf32>
      tpu.vector_store %arg5[%c0_49, %c0_50, %c0_51], %117 {strides = array<i32>} : memref<1x1x1xf32, #tpu.memory_space<vmem>>, vector<1x1x1xf32>,
      %cst_52 = arith.constant 0.000000e+00 : f32
      %119 = vector.broadcast %cst_52 : f32 to vector<2x16xf32>
      %c0_53 = arith.constant 0 : index
      %c0_54 = arith.constant 0 : index
      %120 = vector.load %arg6[%c0_53, %c0_54] : memref<2x16xf32, #tpu.memory_space<vmem>>, vector<2x16xf32>
      tpu.vector_store %arg6[%c0_53, %c0_54], %119 {strides = array<i32>} : memref<2x16xf32, #tpu.memory_space<vmem>>, vector<2x16xf32>,
      %cst_55 = arith.constant 0.000000e+00 : f32
      %121 = vector.broadcast %cst_55 : f32 to vector<2x16xf32>
      %c0_56 = arith.constant 0 : index
      %c0_57 = arith.constant 0 : index
      %122 = vector.load %arg7[%c0_56, %c0_57] : memref<2x16xf32, #tpu.memory_space<vmem>>, vector<2x16xf32>
      tpu.vector_store %arg7[%c0_56, %c0_57], %121 {strides = array<i32>} : memref<2x16xf32, #tpu.memory_space<vmem>>, vector<2x16xf32>,
      %cst_58 = arith.constant 0.000000e+00 : f32
      %123 = vector.broadcast %cst_58 : f32 to vector<1x16xf32>
      %c0_59 = arith.constant 0 : index
      %c0_60 = arith.constant 0 : index
      %124 = vector.load %arg8[%c0_59, %c0_60] : memref<1x16xf32, #tpu.memory_space<vmem>>, vector<1x16xf32>
      tpu.vector_store %arg8[%c0_59, %c0_60], %123 {strides = array<i32>} : memref<1x16xf32, #tpu.memory_space<vmem>>, vector<1x16xf32>,
    } else {
    }
    %c0 = arith.constant 0 : index
    %c0_1 = arith.constant 0 : index
    %c0_2 = arith.constant 0 : index
    %3 = vector.load %arg2[%c0, %c0_1, %c0_2] : memref<1x16x16xf32, #tpu.memory_space<vmem>>, vector<1x16x16xf32>
    %4 = vector.shape_cast %3 : vector<1x16x16xf32> to vector<16x16xf32>
    %c0_3 = arith.constant 0 : index
    %c0_4 = arith.constant 0 : index
    %c0_5 = arith.constant 0 : index
    %5 = vector.load %arg3[%c0_3, %c0_4, %c0_5] : memref<1x16x16xf32, #tpu.memory_space<vmem>>, vector<1x16x16xf32>
    %6 = vector.shape_cast %5 : vector<1x16x16xf32> to vector<16x16xf32>
    %c0_6 = arith.constant 0 : index
    %c0_7 = arith.constant 0 : index
    %c0_8 = arith.constant 0 : index
    %7 = vector.load %arg4[%c0_6, %c0_7, %c0_8] : memref<1x16x16xf32, #tpu.memory_space<vmem>>, vector<1x16x16xf32>
    %8 = vector.shape_cast %7 : vector<1x16x16xf32> to vector<16x16xf32>
    %c0_9 = arith.constant 0 : index
    %c0_10 = arith.constant 0 : index
    %9 = vector.load %arg6[%c0_9, %c0_10] : memref<2x16xf32, #tpu.memory_space<vmem>>, vector<2x16xf32>
    %10 = tpu.concatenate %9, %4 in 0 : vector<2x16xf32>, vector<16x16xf32> -> vector<18x16xf32>
    %c0_11 = arith.constant 0 : index
    %c0_12 = arith.constant 0 : index
    %11 = vector.load %arg7[%c0_11, %c0_12] : memref<2x16xf32, #tpu.memory_space<vmem>>, vector<2x16xf32>
    %12 = tpu.concatenate %11, %6 in 0 : vector<2x16xf32>, vector<16x16xf32> -> vector<18x16xf32>
    %13 = vector.extract_strided_slice %10 {offsets = [0, 0], sizes = [16, 16], strides = [1, 1]} : vector<18x16xf32> to vector<16x16xf32>
    %14 = vector.extract_strided_slice %10 {offsets = [1, 0], sizes = [16, 16], strides = [1, 1]} : vector<18x16xf32> to vector<16x16xf32>
    %15 = vector.extract_strided_slice %10 {offsets = [2, 0], sizes = [16, 16], strides = [1, 1]} : vector<18x16xf32> to vector<16x16xf32>
    %16 = vector.extract_strided_slice %12 {offsets = [0, 0], sizes = [16, 16], strides = [1, 1]} : vector<18x16xf32> to vector<16x16xf32>
    %17 = vector.extract_strided_slice %12 {offsets = [1, 0], sizes = [16, 16], strides = [1, 1]} : vector<18x16xf32> to vector<16x16xf32>
    %18 = vector.extract_strided_slice %12 {offsets = [2, 0], sizes = [16, 16], strides = [1, 1]} : vector<18x16xf32> to vector<16x16xf32>
    %cst = arith.constant 2.000000e+00 : f32
    %19 = vector.broadcast %cst : f32 to vector<16x16xf32>
    %20 = arith.mulf %19, %14 : vector<16x16xf32>
    %21 = arith.addf %13, %20 : vector<16x16xf32>
    %22 = arith.addf %21, %15 : vector<16x16xf32>
    %23 = arith.subf %13, %15 : vector<16x16xf32>
    %cst_13 = arith.constant 2.000000e+00 : f32
    %24 = vector.broadcast %cst_13 : f32 to vector<16x16xf32>
    %25 = arith.mulf %24, %17 : vector<16x16xf32>
    %26 = arith.addf %16, %25 : vector<16x16xf32>
    %27 = arith.addf %26, %18 : vector<16x16xf32>
    %28 = arith.subf %16, %18 : vector<16x16xf32>
    %c0_14 = arith.constant 0 : index
    %c0_15 = arith.constant 0 : index
    %29 = vector.load %arg8[%c0_14, %c0_15] : memref<1x16xf32, #tpu.memory_space<vmem>>, vector<1x16xf32>
    %30 = vector.extract_strided_slice %8 {offsets = [0, 0], sizes = [15, 16], strides = [1, 1]} : vector<16x16xf32> to vector<15x16xf32>
    %31 = tpu.concatenate %29, %30 in 0 : vector<1x16xf32>, vector<15x16xf32> -> vector<16x16xf32>
    %c0_16 = arith.constant 0 : index
    %c0_17 = arith.constant 0 : index
    %c0_18 = arith.constant 0 : index
    %32 = vector.load %arg5[%c0_16, %c0_17, %c0_18] : memref<1x1x1xf32, #tpu.memory_space<vmem>>, vector<1x1x1xf32>
    %cst_19 = arith.constant 0.000000e+00 : f32
    %33 = vector.broadcast %cst_19 : f32 to vector<16x1xf32>
    %34 = vector.extract_strided_slice %22 {offsets = [0, 0], sizes = [16, 15], strides = [1, 1]} : vector<16x16xf32> to vector<16x15xf32>
    %35 = tpu.concatenate %33, %34 in 1 : vector<16x1xf32>, vector<16x15xf32> -> vector<16x16xf32>
    %cst_20 = arith.constant 0.000000e+00 : f32
    %36 = vector.broadcast %cst_20 : f32 to vector<16x1xf32>
    %37 = vector.extract_strided_slice %22 {offsets = [0, 1], sizes = [16, 15], strides = [1, 1]} : vector<16x16xf32> to vector<16x15xf32>
    %38 = tpu.concatenate %37, %36 in 1 : vector<16x15xf32>, vector<16x1xf32> -> vector<16x16xf32>
    %39 = arith.subf %35, %38 : vector<16x16xf32>
    %cst_21 = arith.constant 0.000000e+00 : f32
    %40 = vector.broadcast %cst_21 : f32 to vector<16x1xf32>
    %41 = vector.extract_strided_slice %23 {offsets = [0, 0], sizes = [16, 15], strides = [1, 1]} : vector<16x16xf32> to vector<16x15xf32>
    %42 = tpu.concatenate %40, %41 in 1 : vector<16x1xf32>, vector<16x15xf32> -> vector<16x16xf32>
    %cst_22 = arith.constant 2.000000e+00 : f32
    %43 = vector.broadcast %cst_22 : f32 to vector<16x16xf32>
    %44 = arith.mulf %43, %23 : vector<16x16xf32>
    %45 = arith.addf %42, %44 : vector<16x16xf32>
    %cst_23 = arith.constant 0.000000e+00 : f32
    %46 = vector.broadcast %cst_23 : f32 to vector<16x1xf32>
    %47 = vector.extract_strided_slice %23 {offsets = [0, 1], sizes = [16, 15], strides = [1, 1]} : vector<16x16xf32> to vector<16x15xf32>
    %48 = tpu.concatenate %47, %46 in 1 : vector<16x15xf32>, vector<16x1xf32> -> vector<16x16xf32>
    %49 = arith.addf %45, %48 : vector<16x16xf32>
    %cst_24 = arith.constant 0.000000e+00 : f32
    %50 = vector.broadcast %cst_24 : f32 to vector<16x1xf32>
    %51 = vector.extract_strided_slice %27 {offsets = [0, 0], sizes = [16, 15], strides = [1, 1]} : vector<16x16xf32> to vector<16x15xf32>
    %52 = tpu.concatenate %50, %51 in 1 : vector<16x1xf32>, vector<16x15xf32> -> vector<16x16xf32>
    %cst_25 = arith.constant 0.000000e+00 : f32
    %53 = vector.broadcast %cst_25 : f32 to vector<16x1xf32>
    %54 = vector.extract_strided_slice %27 {offsets = [0, 1], sizes = [16, 15], strides = [1, 1]} : vector<16x16xf32> to vector<16x15xf32>
    %55 = tpu.concatenate %54, %53 in 1 : vector<16x15xf32>, vector<16x1xf32> -> vector<16x16xf32>
    %56 = arith.subf %52, %55 : vector<16x16xf32>
    %cst_26 = arith.constant 0.000000e+00 : f32
    %57 = vector.broadcast %cst_26 : f32 to vector<16x1xf32>
    %58 = vector.extract_strided_slice %28 {offsets = [0, 0], sizes = [16, 15], strides = [1, 1]} : vector<16x16xf32> to vector<16x15xf32>
    %59 = tpu.concatenate %57, %58 in 1 : vector<16x1xf32>, vector<16x15xf32> -> vector<16x16xf32>
    %cst_27 = arith.constant 2.000000e+00 : f32
    %60 = vector.broadcast %cst_27 : f32 to vector<16x16xf32>
    %61 = arith.mulf %60, %28 : vector<16x16xf32>
    %62 = arith.addf %59, %61 : vector<16x16xf32>
    %cst_28 = arith.constant 0.000000e+00 : f32
    %63 = vector.broadcast %cst_28 : f32 to vector<16x1xf32>
    %64 = vector.extract_strided_slice %28 {offsets = [0, 1], sizes = [16, 15], strides = [1, 1]} : vector<16x16xf32> to vector<16x15xf32>
    %65 = tpu.concatenate %64, %63 in 1 : vector<16x15xf32>, vector<16x1xf32> -> vector<16x16xf32>
    %66 = arith.addf %62, %65 : vector<16x16xf32>
    %67 = arith.mulf %39, %39 : vector<16x16xf32>
    %68 = arith.mulf %49, %49 : vector<16x16xf32>
    %69 = arith.addf %67, %68 : vector<16x16xf32>
    %cst_29 = arith.constant 9.99999997E-7 : f32
    %70 = vector.broadcast %cst_29 : f32 to vector<16x16xf32>
    %71 = arith.addf %69, %70 : vector<16x16xf32>
    %72 = arith.mulf %56, %56 : vector<16x16xf32>
    %73 = arith.mulf %66, %66 : vector<16x16xf32>
    %74 = arith.addf %72, %73 : vector<16x16xf32>
    %cst_30 = arith.constant 9.99999997E-7 : f32
    %75 = vector.broadcast %cst_30 : f32 to vector<16x16xf32>
    %76 = arith.addf %74, %75 : vector<16x16xf32>
    %77 = math.rsqrt %71 : vector<16x16xf32>
    %78 = math.rsqrt %76 : vector<16x16xf32>
    %79 = arith.mulf %71, %77 : vector<16x16xf32>
    %80 = arith.mulf %76, %78 : vector<16x16xf32>
    %81 = arith.mulf %39, %56 : vector<16x16xf32>
    %82 = arith.mulf %49, %66 : vector<16x16xf32>
    %83 = arith.addf %81, %82 : vector<16x16xf32>
    %84 = arith.mulf %77, %78 : vector<16x16xf32>
    %85 = arith.mulf %83, %84 : vector<16x16xf32>
    %86 = math.absf %85 : vector<16x16xf32>
    %cst_31 = arith.constant 1.000000e+00 : f32
    %87 = vector.broadcast %cst_31 : f32 to vector<16x16xf32>
    %88 = arith.subf %87, %86 : vector<16x16xf32>
    %89 = arith.mulf %88, %80 : vector<16x16xf32>
    %cst_32 = arith.constant 1.500000e+00 : f32
    %90 = vector.broadcast %cst_32 : f32 to vector<16x16xf32>
    %91 = arith.mulf %90, %79 : vector<16x16xf32>
    %92 = arith.subf %91, %80 : vector<16x16xf32>
    %cst_33 = arith.constant 0.000000e+00 : f32
    %93 = vector.broadcast %cst_33 : f32 to vector<16x16xf32>
    %94 = arith.maximumf %92, %93 : vector<16x16xf32>
    %cst_34 = arith.constant 5.000000e-01 : f32
    %95 = vector.broadcast %cst_34 : f32 to vector<16x16xf32>
    %96 = arith.mulf %95, %89 : vector<16x16xf32>
    %cst_35 = arith.constant 5.000000e-01 : f32
    %97 = vector.broadcast %cst_35 : f32 to vector<16x16xf32>
    %98 = arith.mulf %97, %94 : vector<16x16xf32>
    %99 = arith.addf %96, %98 : vector<16x16xf32>
    %100 = arith.mulf %99, %31 : vector<16x16xf32>
    %101 = vector.shape_cast %100 : vector<16x16xf32> to vector<1x16x16xf32>
    %cst_36 = arith.constant dense<0.000000e+00> : vector<1xf32>
    %102 = vector.multi_reduction <add>, %101, %cst_36 [1, 2] : vector<1x16x16xf32> to vector<1xf32>
    %103 = vector.shape_cast %102 : vector<1xf32> to vector<1x1x1xf32>
    %104 = vector.extract %103[0, 0, 0] : f32 from vector<1x1x1xf32>
    %105 = vector.broadcast %104 : f32 to vector<1x1x1xf32>
    %106 = arith.addf %32, %105 : vector<1x1x1xf32>
    %c0_37 = arith.constant 0 : index
    %c0_38 = arith.constant 0 : index
    %c0_39 = arith.constant 0 : index
    %107 = vector.load %arg5[%c0_37, %c0_38, %c0_39] : memref<1x1x1xf32, #tpu.memory_space<vmem>>, vector<1x1x1xf32>
    tpu.vector_store %arg5[%c0_37, %c0_38, %c0_39], %106 {strides = array<i32>} : memref<1x1x1xf32, #tpu.memory_space<vmem>>, vector<1x1x1xf32>,
    %c0_i32_40 = arith.constant 0 : i32
    %108 = arith.cmpi eq, %arg1, %c0_i32_40 : i32
    %109 = arith.extui %108 : i1 to i32
    %c0_i32_41 = arith.constant 0 : i32
    %110 = arith.cmpi ne, %109, %c0_i32_41 : i32
    scf.if %110 {
      %117 = vector.extract_strided_slice %10 {offsets = [16, 0], sizes = [1, 16], strides = [1, 1]} : vector<18x16xf32> to vector<1x16xf32>
      %118 = vector.extract_strided_slice %10 {offsets = [17, 0], sizes = [1, 16], strides = [1, 1]} : vector<18x16xf32> to vector<1x16xf32>
      %119 = vector.extract_strided_slice %12 {offsets = [16, 0], sizes = [1, 16], strides = [1, 1]} : vector<18x16xf32> to vector<1x16xf32>
      %120 = vector.extract_strided_slice %12 {offsets = [17, 0], sizes = [1, 16], strides = [1, 1]} : vector<18x16xf32> to vector<1x16xf32>
      %c0_48 = arith.constant 0 : index
      %c0_49 = arith.constant 0 : index
      %c0_50 = arith.constant 0 : index
      %121 = vector.load %arg5[%c0_48, %c0_49, %c0_50] : memref<1x1x1xf32, #tpu.memory_space<vmem>>, vector<1x1x1xf32>
      %cst_51 = arith.constant 2.000000e+00 : f32
      %122 = vector.broadcast %cst_51 : f32 to vector<1x16xf32>
      %123 = arith.mulf %122, %118 : vector<1x16xf32>
      %124 = arith.addf %117, %123 : vector<1x16xf32>
      %cst_52 = arith.constant 2.000000e+00 : f32
      %125 = vector.broadcast %cst_52 : f32 to vector<1x16xf32>
      %126 = arith.mulf %125, %120 : vector<1x16xf32>
      %127 = arith.addf %119, %126 : vector<1x16xf32>
      %128 = vector.extract_strided_slice %8 {offsets = [15, 0], sizes = [1, 16], strides = [1, 1]} : vector<16x16xf32> to vector<1x16xf32>
      %cst_53 = arith.constant 0.000000e+00 : f32
      %129 = vector.broadcast %cst_53 : f32 to vector<1x1xf32>
      %130 = vector.extract_strided_slice %124 {offsets = [0, 0], sizes = [1, 15], strides = [1, 1]} : vector<1x16xf32> to vector<1x15xf32>
      %131 = tpu.concatenate %129, %130 in 1 : vector<1x1xf32>, vector<1x15xf32> -> vector<1x16xf32>
      %cst_54 = arith.constant 0.000000e+00 : f32
      %132 = vector.broadcast %cst_54 : f32 to vector<1x1xf32>
      %133 = vector.extract_strided_slice %124 {offsets = [0, 1], sizes = [1, 15], strides = [1, 1]} : vector<1x16xf32> to vector<1x15xf32>
      %134 = tpu.concatenate %133, %132 in 1 : vector<1x15xf32>, vector<1x1xf32> -> vector<1x16xf32>
      %135 = arith.subf %131, %134 : vector<1x16xf32>
      %cst_55 = arith.constant 0.000000e+00 : f32
      %136 = vector.broadcast %cst_55 : f32 to vector<1x1xf32>
      %137 = vector.extract_strided_slice %117 {offsets = [0, 0], sizes = [1, 15], strides = [1, 1]} : vector<1x16xf32> to vector<1x15xf32>
      %138 = tpu.concatenate %136, %137 in 1 : vector<1x1xf32>, vector<1x15xf32> -> vector<1x16xf32>
      %cst_56 = arith.constant 2.000000e+00 : f32
      %139 = vector.broadcast %cst_56 : f32 to vector<1x16xf32>
      %140 = arith.mulf %139, %117 : vector<1x16xf32>
      %141 = arith.addf %138, %140 : vector<1x16xf32>
      %cst_57 = arith.constant 0.000000e+00 : f32
      %142 = vector.broadcast %cst_57 : f32 to vector<1x1xf32>
      %143 = vector.extract_strided_slice %117 {offsets = [0, 1], sizes = [1, 15], strides = [1, 1]} : vector<1x16xf32> to vector<1x15xf32>
      %144 = tpu.concatenate %143, %142 in 1 : vector<1x15xf32>, vector<1x1xf32> -> vector<1x16xf32>
      %145 = arith.addf %141, %144 : vector<1x16xf32>
      %cst_58 = arith.constant 0.000000e+00 : f32
      %146 = vector.broadcast %cst_58 : f32 to vector<1x1xf32>
      %147 = vector.extract_strided_slice %127 {offsets = [0, 0], sizes = [1, 15], strides = [1, 1]} : vector<1x16xf32> to vector<1x15xf32>
      %148 = tpu.concatenate %146, %147 in 1 : vector<1x1xf32>, vector<1x15xf32> -> vector<1x16xf32>
      %cst_59 = arith.constant 0.000000e+00 : f32
      %149 = vector.broadcast %cst_59 : f32 to vector<1x1xf32>
      %150 = vector.extract_strided_slice %127 {offsets = [0, 1], sizes = [1, 15], strides = [1, 1]} : vector<1x16xf32> to vector<1x15xf32>
      %151 = tpu.concatenate %150, %149 in 1 : vector<1x15xf32>, vector<1x1xf32> -> vector<1x16xf32>
      %152 = arith.subf %148, %151 : vector<1x16xf32>
      %cst_60 = arith.constant 0.000000e+00 : f32
      %153 = vector.broadcast %cst_60 : f32 to vector<1x1xf32>
      %154 = vector.extract_strided_slice %119 {offsets = [0, 0], sizes = [1, 15], strides = [1, 1]} : vector<1x16xf32> to vector<1x15xf32>
      %155 = tpu.concatenate %153, %154 in 1 : vector<1x1xf32>, vector<1x15xf32> -> vector<1x16xf32>
      %cst_61 = arith.constant 2.000000e+00 : f32
      %156 = vector.broadcast %cst_61 : f32 to vector<1x16xf32>
      %157 = arith.mulf %156, %119 : vector<1x16xf32>
      %158 = arith.addf %155, %157 : vector<1x16xf32>
      %cst_62 = arith.constant 0.000000e+00 : f32
      %159 = vector.broadcast %cst_62 : f32 to vector<1x1xf32>
      %160 = vector.extract_strided_slice %119 {offsets = [0, 1], sizes = [1, 15], strides = [1, 1]} : vector<1x16xf32> to vector<1x15xf32>
      %161 = tpu.concatenate %160, %159 in 1 : vector<1x15xf32>, vector<1x1xf32> -> vector<1x16xf32>
      %162 = arith.addf %158, %161 : vector<1x16xf32>
      %163 = arith.mulf %135, %135 : vector<1x16xf32>
      %164 = arith.mulf %145, %145 : vector<1x16xf32>
      %165 = arith.addf %163, %164 : vector<1x16xf32>
      %cst_63 = arith.constant 9.99999997E-7 : f32
      %166 = vector.broadcast %cst_63 : f32 to vector<1x16xf32>
      %167 = arith.addf %165, %166 : vector<1x16xf32>
      %168 = arith.mulf %152, %152 : vector<1x16xf32>
      %169 = arith.mulf %162, %162 : vector<1x16xf32>
      %170 = arith.addf %168, %169 : vector<1x16xf32>
      %cst_64 = arith.constant 9.99999997E-7 : f32
      %171 = vector.broadcast %cst_64 : f32 to vector<1x16xf32>
      %172 = arith.addf %170, %171 : vector<1x16xf32>
      %173 = math.rsqrt %167 : vector<1x16xf32>
      %174 = math.rsqrt %172 : vector<1x16xf32>
      %175 = arith.mulf %167, %173 : vector<1x16xf32>
      %176 = arith.mulf %172, %174 : vector<1x16xf32>
      %177 = arith.mulf %135, %152 : vector<1x16xf32>
      %178 = arith.mulf %145, %162 : vector<1x16xf32>
      %179 = arith.addf %177, %178 : vector<1x16xf32>
      %180 = arith.mulf %173, %174 : vector<1x16xf32>
      %181 = arith.mulf %179, %180 : vector<1x16xf32>
      %182 = math.absf %181 : vector<1x16xf32>
      %cst_65 = arith.constant 1.000000e+00 : f32
      %183 = vector.broadcast %cst_65 : f32 to vector<1x16xf32>
      %184 = arith.subf %183, %182 : vector<1x16xf32>
      %185 = arith.mulf %184, %176 : vector<1x16xf32>
      %cst_66 = arith.constant 1.500000e+00 : f32
      %186 = vector.broadcast %cst_66 : f32 to vector<1x16xf32>
      %187 = arith.mulf %186, %175 : vector<1x16xf32>
      %188 = arith.subf %187, %176 : vector<1x16xf32>
      %cst_67 = arith.constant 0.000000e+00 : f32
      %189 = vector.broadcast %cst_67 : f32 to vector<1x16xf32>
      %190 = arith.maximumf %188, %189 : vector<1x16xf32>
      %cst_68 = arith.constant 5.000000e-01 : f32
      %191 = vector.broadcast %cst_68 : f32 to vector<1x16xf32>
      %192 = arith.mulf %191, %185 : vector<1x16xf32>
      %cst_69 = arith.constant 5.000000e-01 : f32
      %193 = vector.broadcast %cst_69 : f32 to vector<1x16xf32>
      %194 = arith.mulf %193, %190 : vector<1x16xf32>
      %195 = arith.addf %192, %194 : vector<1x16xf32>
      %196 = arith.mulf %195, %128 : vector<1x16xf32>
      %197 = vector.shape_cast %196 : vector<1x16xf32> to vector<1x1x16xf32>
      %cst_70 = arith.constant dense<0.000000e+00> : vector<1xf32>
      %198 = vector.multi_reduction <add>, %197, %cst_70 [1, 2] : vector<1x1x16xf32> to vector<1xf32>
      %199 = vector.shape_cast %198 : vector<1xf32> to vector<1x1x1xf32>
      %200 = vector.extract %199[0, 0, 0] : f32 from vector<1x1x1xf32>
      %201 = vector.broadcast %200 : f32 to vector<1x1x1xf32>
      %202 = arith.addf %121, %201 : vector<1x1x1xf32>
      %c0_71 = arith.constant 0 : index
      %c0_72 = arith.constant 0 : index
      %c0_73 = arith.constant 0 : index
      %203 = vector.load %arg5[%c0_71, %c0_72, %c0_73] : memref<1x1x1xf32, #tpu.memory_space<vmem>>, vector<1x1x1xf32>
      tpu.vector_store %arg5[%c0_71, %c0_72, %c0_73], %202 {strides = array<i32>} : memref<1x1x1xf32, #tpu.memory_space<vmem>>, vector<1x1x1xf32>,
    } else {
    }
    %111 = vector.extract_strided_slice %10 {offsets = [16, 0], sizes = [2, 16], strides = [1, 1]} : vector<18x16xf32> to vector<2x16xf32>
    %c0_42 = arith.constant 0 : index
    %c0_43 = arith.constant 0 : index
    %112 = vector.load %arg6[%c0_42, %c0_43] : memref<2x16xf32, #tpu.memory_space<vmem>>, vector<2x16xf32>
    tpu.vector_store %arg6[%c0_42, %c0_43], %111 {strides = array<i32>} : memref<2x16xf32, #tpu.memory_space<vmem>>, vector<2x16xf32>,
    %113 = vector.extract_strided_slice %12 {offsets = [16, 0], sizes = [2, 16], strides = [1, 1]} : vector<18x16xf32> to vector<2x16xf32>
    %c0_44 = arith.constant 0 : index
    %c0_45 = arith.constant 0 : index
    %114 = vector.load %arg7[%c0_44, %c0_45] : memref<2x16xf32, #tpu.memory_space<vmem>>, vector<2x16xf32>
    tpu.vector_store %arg7[%c0_44, %c0_45], %113 {strides = array<i32>} : memref<2x16xf32, #tpu.memory_space<vmem>>, vector<2x16xf32>,
    %115 = vector.extract_strided_slice %8 {offsets = [15, 0], sizes = [1, 16], strides = [1, 1]} : vector<16x16xf32> to vector<1x16xf32>
    %c0_46 = arith.constant 0 : index
    %c0_47 = arith.constant 0 : index
    %116 = vector.load %arg8[%c0_46, %c0_47] : memref<1x16xf32, #tpu.memory_space<vmem>>, vector<1x16xf32>
    tpu.vector_store %arg8[%c0_46, %c0_47], %115 {strides = array<i32>} : memref<1x16xf32, #tpu.memory_space<vmem>>, vector<1x16xf32>,
    return
  }
  func.func @transform_0(%arg0: i32, %arg1: i32) -> (i32, i32, i32) {
    %c0_i32 = arith.constant 0 : i32
    %c0_i32_0 = arith.constant 0 : i32
    return %arg0, %arg1, %c0_i32 : i32, i32, i32
  }
  func.func @transform_1(%arg0: i32, %arg1: i32) -> (i32, i32, i32) {
    %c0_i32 = arith.constant 0 : i32
    %c0_i32_0 = arith.constant 0 : i32
    return %arg0, %arg1, %c0_i32 : i32, i32, i32
  }
  func.func @transform_2(%arg0: i32, %arg1: i32) -> (i32, i32, i32) {
    %c0_i32 = arith.constant 0 : i32
    %c0_i32_0 = arith.constant 0 : i32
    return %arg0, %arg1, %c0_i32 : i32, i32, i32
  }
  func.func @transform_3(%arg0: i32, %arg1: i32) -> (i32, i32, i32) {
    %c0_i32 = arith.constant 0 : i32
    %c0_i32_0 = arith.constant 0 : i32
    %c0_i32_1 = arith.constant 0 : i32
    return %arg0, %c0_i32, %c0_i32_0 : i32, i32, i32
  }
}

</mosaic_0001>

<llo_original>
// kernel: tpu_custom_call.1
$region0: #{tpu_custom_call.1}
  #allocation0 [shape = 'u32[]', space=smem, size = 0x4, offset = 0x4, fixed_abs, tag = 'smem constant byte address 0x4 - core index']
  #allocation1 [shape = 'u32[144,128]{1,0:T(1,128)}', space=vmem, size = 0x12000, scoped, tag = 'internal scratch']
  #allocation2 [shape = 'f32[2,16]{1,0:T(2,128)}', space=vmem, size = 0x400, scoped, tag = 'scratch operand']
  #allocation3 [shape = 'f32[2,16]{1,0:T(2,128)}', space=vmem, size = 0x400, scoped, tag = 'scratch operand']
  #allocation4 [shape = 'f32[1,16]{1,0:T(1,128)}', space=vmem, size = 0x200, scoped, tag = 'scratch operand']
  %s0 = inlined_call_operand.hbm [shape: f32[2,16,16], index: 0, kind: input, shape index: {}]
  %s1 = inlined_call_operand.hbm [shape: f32[2,16,16], index: 1, kind: input, shape index: {}]
  %s2 = inlined_call_operand.hbm [shape: f32[2,16,16], index: 2, kind: input, shape index: {}]
  %s3 = inlined_call_operand.vmem [shape: f32[2,1,1], index: 3, kind: output, shape index: {}]
  %s4 = sld [smem:[#allocation0]]
  $region65: #{tpu_custom_call.1} parent=0
    _
  %s6 = ssub.s32 1, %s4
  %s7 = scalar_select 0, %s6, %s4
  $region1: #{tpu_custom_call.1} parent=0
    #allocation5 [shape = 'u8[16384]{0}', space=vmem, size = 0x4000, scoped, tag = 'input window, operand 0']
    #allocation6 [shape = 's32[2]{0}', space=sflag, size = 0x8, scoped, tag = 'scoped memory for tpu_custom_call.1']
    #allocation7 [shape = 'u8[16384]{0}', space=vmem, size = 0x4000, scoped, tag = 'input window, operand 1']
    #allocation8 [shape = 's32[2]{0}', space=sflag, size = 0x8, scoped, tag = 'scoped memory for tpu_custom_call.1']
    #allocation9 [shape = 'u8[16384]{0}', space=vmem, size = 0x4000, scoped, tag = 'input window, operand 2']
    %8 = vsyncpa [#allocation6], 0
    %s9 = scalar_lea.sflag [#allocation6], 1
    %10 = vsyncpa %s9, 0
    %11 = vsyncpa [#allocation8], 0
    %s12 = scalar_lea.sflag [#allocation8], 1
    %13 = vsyncpa %s12, 0
    loop: start=0, step=1, limit=4
    $region2: #{tpu_custom_call.1} parent=1 // loop_pre_header
      _
    $region3: #{tpu_custom_call.1} parent=1 // loop_header
      %s15 = sphi 0, %s19
      %p16 = scmp.ge.s32.totalorder %s15, 4
      %s22 = sphi 0, %s34
      %s23 = sphi 0, %s30
      %s24 = sphi 0, %s22
      %s25 = sphi 0, %s23
      %s26 = sphi 0, %s24
      %s27 = sphi 0, %s25
      %s39 = sphi 0, %s41
      %s42 = sphi 0, %s39
      %s43 = sphi 0, %s42
      %s59 = sphi 0, %s43
      %s67 = sphi 0, %s69
      %s70 = sphi 0, %s67
      %s71 = sphi 0, %s70
      %s87 = sphi 0, %s71
      %s95 = sphi 0, %s97
      %s98 = sphi 0, %s95
      %s99 = sphi 0, %s98
      %s115 = sphi 0, %s99
      %s121 = sphi 0, %s123
      %s124 = sphi 0, %s121
      %s125 = sphi 0, %s124
      %s141 = sphi 0, %s125
    $region4: #{tpu_custom_call.1} parent=1 // loop_header_branch
      %18 = sbr.rel (%p16) target = $region8
    $region5: #{tpu_custom_call.1} parent=1 // loop_body
      %s20 = ssub.s32 %s15, 1
      %s21 = ssub.s32 %s15, 2
      %s28 = sadd.s32 1, %s23
      %p29 = scmp.ge.s32.totalorder %s28, 1
      %s30 = scalar_select %p29, 0, %s28
      %s31 = sadd.s32 1, %s22
      %s32 = scalar_select %p29, %s31, %s22
      %p33 = scmp.ge.s32.totalorder %s32, 2
      %s34 = scalar_select %p33, 0, %s32
      %s35 = ssub.s32 %s22, %s34
      %s36 = ssub.s32 %s23, %s30
      %s37 = sor.u32 %s35, %s36
      %p38 = scmp.eq.s32.totalorder %s37, 0
      %s40 = sadd.s32 %s39, 1
      %s41 = scalar_select %p38, %s39, %s40
      %p44 = pneg %p38
      %p45 = scmp.eq.s32.totalorder %s15, 1
      %p46 = por %p44, %p45
      %p47 = scmp.ne.s32.totalorder %s39, %s42
      %p48 = scmp.eq.s32.totalorder %s15, 0
      %p49 = por %p47, %p48
      %p50 = scmp.ne.s32.totalorder %s39, %s42
      %p51 = scmp.eq.s32.totalorder %s20, 1
      %p52 = por %p50, %p51
      %p53 = scmp.ne.s32.totalorder %s42, %s43
      %p54 = scmp.eq.s32.totalorder %s20, 0
      %p55 = por %p53, %p54
      %p56 = scmp.ne.s32.totalorder %s42, %s43
      %p57 = scmp.eq.s32.totalorder %s21, 1
      %p58 = por %p56, %p57
      %p60 = scmp.ne.s32.totalorder %s43, %s59
      %p61 = scmp.eq.s32.totalorder %s21, 0
      %p62 = por %p60, %p61
      %s63 = ssub.s32 %s22, %s34
      %s64 = ssub.s32 %s23, %s30
      %s65 = sor.u32 %s63, %s64
      %p66 = scmp.eq.s32.totalorder %s65, 0
      %s68 = sadd.s32 %s67, 1
      %s69 = scalar_select %p66, %s67, %s68
      %p72 = pneg %p66
      %p73 = scmp.eq.s32.totalorder %s15, 1
      %p74 = por %p72, %p73
      %p75 = scmp.ne.s32.totalorder %s67, %s70
      %p76 = scmp.eq.s32.totalorder %s15, 0
      %p77 = por %p75, %p76
      %p78 = scmp.ne.s32.totalorder %s67, %s70
      %p79 = scmp.eq.s32.totalorder %s20, 1
      %p80 = por %p78, %p79
      %p81 = scmp.ne.s32.totalorder %s70, %s71
      %p82 = scmp.eq.s32.totalorder %s20, 0
      %p83 = por %p81, %p82
      %p84 = scmp.ne.s32.totalorder %s70, %s71
      %p85 = scmp.eq.s32.totalorder %s21, 1
      %p86 = por %p84, %p85
      %p88 = scmp.ne.s32.totalorder %s71, %s87
      %p89 = scmp.eq.s32.totalorder %s21, 0
      %p90 = por %p88, %p89
      %s91 = ssub.s32 %s22, %s34
      %s92 = ssub.s32 %s23, %s30
      %s93 = sor.u32 %s91, %s92
      %p94 = scmp.eq.s32.totalorder %s93, 0
      %s96 = sadd.s32 %s95, 1
      %s97 = scalar_select %p94, %s95, %s96
      %p100 = pneg %p94
      %p101 = scmp.eq.s32.totalorder %s15, 1
      %p102 = por %p100, %p101
      %p103 = scmp.ne.s32.totalorder %s95, %s98
      %p104 = scmp.eq.s32.totalorder %s15, 0
      %p105 = por %p103, %p104
      %p106 = scmp.ne.s32.totalorder %s95, %s98
      %p107 = scmp.eq.s32.totalorder %s20, 1
      %p108 = por %p106, %p107
      %p109 = scmp.ne.s32.totalorder %s98, %s99
      %p110 = scmp.eq.s32.totalorder %s20, 0
      %p111 = por %p109, %p110
      %p112 = scmp.ne.s32.totalorder %s98, %s99
      %p113 = scmp.eq.s32.totalorder %s21, 1
      %p114 = por %p112, %p113
      %p116 = scmp.ne.s32.totalorder %s99, %s115
      %p117 = scmp.eq.s32.totalorder %s21, 0
      %p118 = por %p116, %p117
      %s119 = ssub.s32 %s22, %s34
      %p120 = scmp.eq.s32.totalorder %s119, 0
      %s122 = sadd.s32 %s121, 1
      %s123 = scalar_select %p120, %s121, %s122
      %p126 = pneg %p120
      %p127 = scmp.eq.s32.totalorder %s15, 1
      %p128 = por %p126, %p127
      %p129 = scmp.ne.s32.totalorder %s121, %s124
      %p130 = scmp.eq.s32.totalorder %s15, 0
      %p131 = por %p129, %p130
      %p132 = scmp.ne.s32.totalorder %s121, %s124
      %p133 = scmp.eq.s32.totalorder %s20, 1
      %p134 = por %p132, %p133
      %p135 = scmp.ne.s32.totalorder %s124, %s125
      %p136 = scmp.eq.s32.totalorder %s20, 0
      %p137 = por %p135, %p136
      %p138 = scmp.ne.s32.totalorder %s124, %s125
      %p139 = scmp.eq.s32.totalorder %s21, 1
      %p140 = por %p138, %p139
      %p142 = scmp.ne.s32.totalorder %s125, %s141
      %p143 = scmp.eq.s32.totalorder %s21, 0
      %p144 = por %p142, %p143
      %p145 = scmp.le.s32.totalorder 1, %s15
      %p146 = scmp.lt.s32.totalorder %s15, 3
      %p147 = pnand %p145, %p146
      %p148 = pneg %p147
      // Predicated region
      $region9: #{tpu_custom_call.1} parent=5 // pred_check
        _
      $region10: #{tpu_custom_call.1} parent=5 // pred_check_branch
        %150 = sbr.rel (%p147) target = $region12
      $region11: #{tpu_custom_call.1} parent=5 // pred_region
        %s151 = ssub.s32 %s15, 1
      $region12: #{tpu_custom_call.1} parent=5 // pred_fallthru
        _
      %p152 = scmp.lt.s32.totalorder %s15, 2
      // Predicated region
      $region13: #{tpu_custom_call.1} parent=5 // pred_check
        %p153 = pneg %p152
      $region14: #{tpu_custom_call.1} parent=5 // pred_check_branch
        %155 = sbr.rel (%p153) target = $region16
      $region15: #{tpu_custom_call.1} parent=5 // pred_region
        // Predicated region
        $region17: #{tpu_custom_call.1} parent=15 // pred_check
          %p156 = pneg %p49
        $region18: #{tpu_custom_call.1} parent=15 // pred_check_branch
          %158 = sbr.rel (%p156) target = $region20
        $region19: #{tpu_custom_call.1} parent=15 // pred_region
          %s159 = sand.u32 %s39, 1
          %s160 = scalar_lea.sflag [#allocation6], %s159
          %s161 = sand.u32 %s39, 1
          %s162 = smul.addr %s161, 16
          %s163 = scalar_lea.vmem [#allocation5], %s162
          %s164 = smul.u32 2, %s23
          %s166 = ssub.s32 256, 256
          %167 = vsyncadd %s160, %s166
          %s168 = smul.addr %s22, 2
          %s169 = sadd.s32 %s164, %s168
          %s170 = smul.addr %s169, 128
          %s171 = scalar_lea.hbm %s0, %s170
          %s172 = sshll.u32 %s163, 4
          %s173 = int_to_ptr.vmem [resolvable:$true] %s172
          %178 = dma.hbm_to_vmem [thread:$0]  %s171, 256, %s173, %s160, 128, 128, 8
        $region20: #{tpu_custom_call.1} parent=15 // pred_fallthru
          _
        // Predicated region
        $region21: #{tpu_custom_call.1} parent=15 // pred_check
          %p179 = pneg %p77
        $region22: #{tpu_custom_call.1} parent=15 // pred_check_branch
          %181 = sbr.rel (%p179) target = $region24
        $region23: #{tpu_custom_call.1} parent=15 // pred_region
          %s182 = sand.u32 %s15, 1
          %s183 = scalar_lea.sflag [#allocation8], %s182
          %s184 = sand.u32 %s67, 1
          %s185 = smul.addr %s184, 16
          %s186 = scalar_lea.vmem [#allocation7], %s185
          %s187 = smul.u32 2, %s23
          %s189 = ssub.s32 256, 256
          %190 = vsyncadd %s183, %s189
          %s191 = smul.addr %s22, 2
          %s192 = sadd.s32 %s187, %s191
          %s193 = smul.addr %s192, 128
          %s194 = scalar_lea.hbm %s1, %s193
          %s195 = sshll.u32 %s186, 4
          %s196 = int_to_ptr.vmem [resolvable:$true] %s195
          %201 = dma.hbm_to_vmem [thread:$0]  %s194, 256, %s196, %s183, 128, 128, 8
        $region24: #{tpu_custom_call.1} parent=15 // pred_fallthru
          _
        // Predicated region
        $region25: #{tpu_custom_call.1} parent=15 // pred_check
          %p202 = pneg %p105
        $region26: #{tpu_custom_call.1} parent=15 // pred_check_branch
          %204 = sbr.rel (%p202) target = $region28
        $region27: #{tpu_custom_call.1} parent=15 // pred_region
          %s205 = sand.u32 %s15, 1
          %s206 = scalar_lea.sflag [#allocation8], %s205
          %s207 = sand.u32 %s95, 1
          %s208 = smul.addr %s207, 16
          %s209 = scalar_lea.vmem [#allocation9], %s208
          %s210 = smul.u32 2, %s23
          %s212 = ssub.s32 256, 256
          %213 = vsyncadd %s206, %s212
          %s214 = smul.addr %s22, 2
          %s215 = sadd.s32 %s210, %s214
          %s216 = smul.addr %s215, 128
          %s217 = scalar_lea.hbm %s2, %s216
          %s218 = sshll.u32 %s209, 4
          %s219 = int_to_ptr.vmem [resolvable:$true] %s218
          %224 = dma.hbm_to_vmem [thread:$0]  %s217, 256, %s219, %s206, 128, 128, 8
        $region28: #{tpu_custom_call.1} parent=15 // pred_fallthru
          _
      $region16: #{tpu_custom_call.1} parent=5 // pred_fallthru
        _
      %p225 = scmp.le.s32.totalorder 1, %s15
      %p226 = scmp.lt.s32.totalorder %s15, 3
      %p227 = pnand %p225, %p226
      %p228 = pneg %p227
      // Predicated region
      $region29: #{tpu_custom_call.1} parent=5 // pred_check
        _
      $region30: #{tpu_custom_call.1} parent=5 // pred_check_branch
        %230 = sbr.rel (%p227) target = $region32
      $region31: #{tpu_custom_call.1} parent=5 // pred_region
        %s231 = ssub.s32 %s15, 1
        %s232 = sand.u32 %s42, 1
        %s233 = scalar_lea.sflag [#allocation6], %s232
        %s234 = sand.u32 %s42, 1
        %s235 = smul.addr %s234, 16
        %s236 = scalar_lea.vmem [#allocation5], %s235
        // Predicated region
        $region33: #{tpu_custom_call.1} parent=31 // pred_check
          %p237 = pneg %p55
        $region34: #{tpu_custom_call.1} parent=31 // pred_check_branch
          %239 = sbr.rel (%p237) target = $region36
        $region35: #{tpu_custom_call.1} parent=31 // pred_region
          %240 = dma.done %s233, 256
        $region36: #{tpu_custom_call.1} parent=31 // pred_fallthru
          _
        %s241 = sand.u32 %s20, 1
        %s242 = scalar_lea.sflag [#allocation8], %s241
        %s243 = sand.u32 %s70, 1
        %s244 = smul.addr %s243, 16
        %s245 = scalar_lea.vmem [#allocation7], %s244
        // Predicated region
        $region37: #{tpu_custom_call.1} parent=31 // pred_check
          %p246 = pneg %p83
        $region38: #{tpu_custom_call.1} parent=31 // pred_check_branch
          %248 = sbr.rel (%p246) target = $region40
        $region39: #{tpu_custom_call.1} parent=31 // pred_region
          %249 = dma.done %s242, 256
        $region40: #{tpu_custom_call.1} parent=31 // pred_fallthru
          _
        %s250 = sand.u32 %s20, 1
        %s251 = scalar_lea.sflag [#allocation8], %s250
        %s252 = sand.u32 %s98, 1
        %s253 = smul.addr %s252, 16
        %s254 = scalar_lea.vmem [#allocation9], %s253
        // Predicated region
        $region41: #{tpu_custom_call.1} parent=31 // pred_check
          %p255 = pneg %p111
        $region42: #{tpu_custom_call.1} parent=31 // pred_check_branch
          %257 = sbr.rel (%p255) target = $region44
        $region43: #{tpu_custom_call.1} parent=31 // pred_region
          %258 = dma.done %s251, 256
        $region44: #{tpu_custom_call.1} parent=31 // pred_fallthru
          _
        %s259 = sand.u32 %s42, 1
        %s260 = scalar_lea.sflag [#allocation6], %s259
        %s261 = sand.u32 %s42, 1
        %s262 = smul.addr %s261, 16
        %s263 = scalar_lea.vmem [#allocation5], %s262
        %p264 = pneg %p55
        %p265 = pneg %p52
        %s266 = sand.u32 %s20, 1
        %s267 = scalar_lea.sflag [#allocation8], %s266
        %s268 = sand.u32 %s70, 1
        %s269 = smul.addr %s268, 16
        %s270 = scalar_lea.vmem [#allocation7], %s269
        %p271 = pneg %p83
        %p272 = pneg %p80
        %s273 = sand.u32 %s20, 1
        %s274 = scalar_lea.sflag [#allocation8], %s273
        %s275 = sand.u32 %s98, 1
        %s276 = smul.addr %s275, 16
        %s277 = scalar_lea.vmem [#allocation9], %s276
        %p278 = pneg %p111
        %p279 = pneg %p108
        %p280 = pneg %p137
        %p281 = pneg %p134
        %p282 = scmp.lt.s32.totalorder %s24, 1
        %s283 = scalar_select %p282, %s24, 1
        %s284 = scalar_lea.vmem %s3, %s283
        %s285 = smul.u32 2, %s25
        %s286 = smul.u32 2, %s25
        %s287 = smul.u32 2, %s25
        %p288 = scmp.lt.s32.totalorder %s24, 1
        %s289 = scalar_select %p288, %s24, 1
        %s290 = scalar_lea.vmem %s3, %s289
        %p291 = scmp.eq.s32.totalorder %s25, 0
        // Predicated region
        $region45: #{tpu_custom_call.1} parent=31 // pred_check
          %p292 = pneg %p291
        $region46: #{tpu_custom_call.1} parent=31 // pred_check_branch
          %294 = sbr.rel (%p292) target = $region48
        $region47: #{tpu_custom_call.1} parent=31 // pred_region
          %vm295 = vcmask 0
          %296 = vst.msk [vmem:[%s290] sm:$0x1] %vm295, 0.0
          %vm297 = vcmask 123904
          %298 = vst.msk [vmem:[#allocation2] sm:$0x3] %vm297, 0.0
          %299 = vst.msk [vmem:[#allocation3] sm:$0x3] %vm297, 0.0
          %vm300 = vcmask 122880
          %301 = vst.msk [vmem:[#allocation4] sm:$0x1] %vm300, 0.0
        $region48: #{tpu_custom_call.1} parent=31 // pred_fallthru
          _
        %v302 = vld [vmem:[%s236] sm:$0xff]
        %v303 = vld [vmem:[%s236 + $0x8] sm:$0xff]
        %v304 = vld [vmem:[%s245] sm:$0xff]
        %v305 = vld [vmem:[%s245 + $0x8] sm:$0xff]
        %v306 = vld [vmem:[%s254] sm:$0xff]
        %v307 = vld [vmem:[%s254 + $0x8] sm:$0xff]
        %v308 = vld [vmem:[#allocation2] sm:$0x3]
        %vm311 = vcmask 1041408
        %v312 = vrot.slane %v302, 6
        %v313 = vrot.slane %v303, 6
        %v314 = vsel %vm311, %v312, %v313
        %v318 = vsel %vm311, %v308, %v312
        %v319 = vld [vmem:[#allocation3] sm:$0x3]
        %v322 = vrot.slane %v304, 6
        %v323 = vrot.slane %v305, 6
        %v324 = vsel %vm311, %v322, %v323
        %v328 = vsel %vm311, %v319, %v322
        %v329 = vmul.f32 %v318, 2.0
        %v330 = vmul.f32 %v314, 2.0
        %v331 = vmul.f32 %v313, 2.0
        %vm335 = vcmask 1046528
        %v336 = vrot.slane %v329, 1
        %v337 = vrot.slane %v330, 1
        %v338 = vsel %vm335, %v336, %v337
        %v339 = vrot.slane %v331, 1
        %v340 = vsel %vm335, %v337, %v339
        %v343 = vadd.f32 %v318, %v338
        %v344 = vadd.f32 %v314, %v340
        %vm346 = vcmask 1045504
        %v347 = vrot.slane %v318, 2
        %v348 = vrot.slane %v314, 2
        %v349 = vsel %vm346, %v347, %v348
        %v350 = vrot.slane %v313, 2
        %v351 = vsel %vm346, %v348, %v350
        %v354 = vadd.f32 %v343, %v349
        %v355 = vadd.f32 %v344, %v351
        %v356 = vsub.f32 %v318, %v349
        %v357 = vsub.f32 %v314, %v351
        %v358 = vmul.f32 %v328, 2.0
        %v359 = vmul.f32 %v324, 2.0
        %v360 = vmul.f32 %v323, 2.0
        %v364 = vrot.slane %v358, 1
        %v365 = vrot.slane %v359, 1
        %v366 = vsel %vm335, %v364, %v365
        %v367 = vrot.slane %v360, 1
        %v368 = vsel %vm335, %v365, %v367
        %v371 = vadd.f32 %v328, %v366
        %v372 = vadd.f32 %v324, %v368
        %v374 = vrot.slane %v328, 2
        %v375 = vrot.slane %v324, 2
        %v376 = vsel %vm346, %v374, %v375
        %v377 = vrot.slane %v323, 2
        %v378 = vsel %vm346, %v375, %v377
        %v381 = vadd.f32 %v371, %v376
        %v382 = vadd.f32 %v372, %v378
        %v383 = vsub.f32 %v328, %v376
        %v384 = vsub.f32 %v324, %v378
        %v385 = vld [vmem:[#allocation4] sm:$0x1]
        %vm388 = vcmask 1040384
        %v389 = vrot.slane %v306, 7
        %v390 = vrot.slane %v307, 7
        %v391 = vsel %vm388, %v389, %v390
        %v394 = vsel %vm388, %v385, %v389
        %v395 = vld [vmem:[%s290] sm:$0x1]
        %398 = vrot.lane.b32.xlu0 %v354, 1
        %v399 = vpop.permute.xlu0 %398
        %400 = vrot.lane.b32.xlu0 %v355, 1
        %v401 = vpop.permute.xlu0 %400
        %vm404 = vcmask 7168
        %v405 = vsel %vm404, 0.0, %v399
        %v406 = vsel %vm404, 0.0, %v401
        %407 = vrot.lane.b32.xlu0 %v354, 127
        %v408 = vpop.permute.xlu0 %407
        %409 = vrot.lane.b32.xlu0 %v355, 127
        %v410 = vpop.permute.xlu0 %409
        %vm413 = vcmask 121856
        %v414 = vsel %vm413, %v408, 0.0
        %v415 = vsel %vm413, %v410, 0.0
        %v416 = vsub.f32 %v405, %v414
        %v417 = vsub.f32 %v406, %v415
        %420 = vrot.lane.b32.xlu0 %v356, 1
        %v421 = vpop.permute.xlu0 %420
        %422 = vrot.lane.b32.xlu0 %v357, 1
        %v423 = vpop.permute.xlu0 %422
        %v426 = vsel %vm404, 0.0, %v421
        %v427 = vsel %vm404, 0.0, %v423
        %v428 = vmul.f32 %v356, 2.0
        %v429 = vmul.f32 %v357, 2.0
        %v430 = vadd.f32 %v426, %v428
        %v431 = vadd.f32 %v427, %v429
        %432 = vrot.lane.b32.xlu0 %v356, 127
        %v433 = vpop.permute.xlu0 %432
        %434 = vrot.lane.b32.xlu0 %v357, 127
        %v435 = vpop.permute.xlu0 %434
        %v438 = vsel %vm413, %v433, 0.0
        %v439 = vsel %vm413, %v435, 0.0
        %v440 = vadd.f32 %v430, %v438
        %v441 = vadd.f32 %v431, %v439
        %444 = vrot.lane.b32.xlu0 %v381, 1
        %v445 = vpop.permute.xlu0 %444
        %446 = vrot.lane.b32.xlu0 %v382, 1
        %v447 = vpop.permute.xlu0 %446
        %v450 = vsel %vm404, 0.0, %v445
        %v451 = vsel %vm404, 0.0, %v447
        %452 = vrot.lane.b32.xlu0 %v381, 127
        %v453 = vpop.permute.xlu0 %452
        %454 = vrot.lane.b32.xlu0 %v382, 127
        %v455 = vpop.permute.xlu0 %454
        %v458 = vsel %vm413, %v453, 0.0
        %v459 = vsel %vm413, %v455, 0.0
        %v460 = vsub.f32 %v450, %v458
        %v461 = vsub.f32 %v451, %v459
        %464 = vrot.lane.b32.xlu0 %v383, 1
        %v465 = vpop.permute.xlu0 %464
        %466 = vrot.lane.b32.xlu0 %v384, 1
        %v467 = vpop.permute.xlu0 %466
        %v470 = vsel %vm404, 0.0, %v465
        %v471 = vsel %vm404, 0.0, %v467
        %v472 = vmul.f32 %v383, 2.0
        %v473 = vmul.f32 %v384, 2.0
        %v474 = vadd.f32 %v470, %v472
        %v475 = vadd.f32 %v471, %v473
        %476 = vrot.lane.b32.xlu0 %v383, 127
        %v477 = vpop.permute.xlu0 %476
        %478 = vrot.lane.b32.xlu0 %v384, 127
        %v479 = vpop.permute.xlu0 %478
        %v482 = vsel %vm413, %v477, 0.0
        %v483 = vsel %vm413, %v479, 0.0
        %v484 = vadd.f32 %v474, %v482
        %v485 = vadd.f32 %v475, %v483
        %v486 = vmul.f32 %v416, %v416
        %v487 = vmul.f32 %v417, %v417
        %v488 = vmul.f32 %v440, %v440
        %v489 = vmul.f32 %v441, %v441
        %v490 = vadd.f32 %v486, %v488
        %v491 = vadd.f32 %v487, %v489
        %v492 = vadd.f32 %v490, 1e-06
        %v493 = vadd.f32 %v491, 1e-06
        %v494 = vmul.f32 %v460, %v460
        %v495 = vmul.f32 %v461, %v461
        %v496 = vmul.f32 %v484, %v484
        %v497 = vmul.f32 %v485, %v485
        %v498 = vadd.f32 %v494, %v496
        %v499 = vadd.f32 %v495, %v497
        %v500 = vadd.f32 %v498, 1e-06
        %v501 = vadd.f32 %v499, 1e-06
        %v502 = vrsqrt.pop %v492
        %v503 = vrsqrt.pop %v493
        %v504 = vrsqrt.pop %v500
        %v505 = vrsqrt.pop %v501
        %v506 = vmul.f32 %v492, %v502
        %v507 = vmul.f32 %v493, %v503
        %v508 = vmul.f32 %v500, %v504
        %v509 = vmul.f32 %v501, %v505
        %v510 = vmul.f32 %v416, %v460
        %v511 = vmul.f32 %v417, %v461
        %v512 = vmul.f32 %v440, %v484
        %v513 = vmul.f32 %v441, %v485
        %v514 = vadd.f32 %v510, %v512
        %v515 = vadd.f32 %v511, %v513
        %v516 = vmul.f32 %v502, %v504
        %v517 = vmul.f32 %v503, %v505
        %v518 = vmul.f32 %v514, %v516
        %v519 = vmul.f32 %v515, %v517
        %v520 = vand.u32 2147483647, %v518
        %v521 = vand.u32 2147483647, %v519
        %v522 = vsub.f32 1.0, %v520
        %v523 = vsub.f32 1.0, %v521
        %v524 = vmul.f32 %v522, %v508
        %v525 = vmul.f32 %v523, %v509
        %v526 = vmul.f32 %v506, 1.5
        %v527 = vmul.f32 %v507, 1.5
        %v528 = vsub.f32 %v526, %v508
        %v529 = vsub.f32 %v527, %v509
        %v530 = vmax.f32 %v528, 0.0
        %v531 = vmax.f32 %v529, 0.0
        %v532 = vmul.f32 %v524, 0.5
        %v533 = vmul.f32 %v525, 0.5
        %v534 = vmul.f32 %v530, 0.5
        %v535 = vmul.f32 %v531, 0.5
        %v536 = vadd.f32 %v532, %v534
        %v537 = vadd.f32 %v533, %v535
        %v538 = vmul.f32 %v536, %v394
        %v539 = vmul.f32 %v537, %v391
        %vm540 = vcmask 130048
        %v541 = vsel %vm540, %v538, 0.0
        %v542 = vsel %vm540, %v539, 0.0
        %v543 = vadd.f32 %v541, %v542
        %544 = vadd.xlane.f32.xlu0 %v543
        %v545 = vpop.xlane.xlu0 %544
        %v546 = vrot.slane %v545, 4
        %v547 = vadd.f32 %v545, %v546
        %v548 = vrot.slane %v547, 2
        %v549 = vadd.f32 %v547, %v548
        %v550 = vrot.slane %v549, 1
        %v551 = vadd.f32 %v549, %v550
        %s552 = vtos %v551
        %v553 = vstv %s552
        %v554 = vadd.f32 %v395, %v553
        %vm555 = vcmask 0
        %556 = vst.msk [vmem:[%s290] sm:$0x1] %vm555, %v554
        // Predicated region
        $region49: #{tpu_custom_call.1} parent=31 // pred_check
          %p557 = pneg %p291
        $region50: #{tpu_custom_call.1} parent=31 // pred_check_branch
          %559 = sbr.rel (%p557) target = $region52
        $region51: #{tpu_custom_call.1} parent=31 // pred_region
          %v560 = vld [vmem:[%s290] sm:$0x1]
          %v562 = vadd.f32 %v313, %v339
          %v564 = vadd.f32 %v323, %v367
          %566 = vrot.lane.b32.xlu0 %v562, 1
          %v567 = vpop.permute.xlu0 %566
          %v569 = vsel %vm404, 0.0, %v567
          %570 = vrot.lane.b32.xlu0 %v562, 127
          %v571 = vpop.permute.xlu0 %570
          %v573 = vsel %vm413, %v571, 0.0
          %v574 = vsub.f32 %v569, %v573
          %575 = vrot.lane.b32.xlu0 %v313, 1
          %v576 = vpop.permute.xlu0 %575
          %v578 = vsel %vm404, 0.0, %v576
          %v579 = vadd.f32 %v578, %v331
          %580 = vrot.lane.b32.xlu0 %v313, 127
          %v581 = vpop.permute.xlu0 %580
          %v583 = vsel %vm413, %v581, 0.0
          %v584 = vadd.f32 %v579, %v583
          %586 = vrot.lane.b32.xlu0 %v564, 1
          %v587 = vpop.permute.xlu0 %586
          %v589 = vsel %vm404, 0.0, %v587
          %590 = vrot.lane.b32.xlu0 %v564, 127
          %v591 = vpop.permute.xlu0 %590
          %v593 = vsel %vm413, %v591, 0.0
          %v594 = vsub.f32 %v589, %v593
          %595 = vrot.lane.b32.xlu0 %v323, 1
          %v596 = vpop.permute.xlu0 %595
          %v598 = vsel %vm404, 0.0, %v596
          %v599 = vadd.f32 %v598, %v360
          %600 = vrot.lane.b32.xlu0 %v323, 127
          %v601 = vpop.permute.xlu0 %600
          %v603 = vsel %vm413, %v601, 0.0
          %v604 = vadd.f32 %v599, %v603
          %v605 = vmul.f32 %v574, %v574
          %v606 = vmul.f32 %v584, %v584
          %v607 = vadd.f32 %v605, %v606
          %v608 = vadd.f32 %v607, 1e-06
          %v609 = vmul.f32 %v594, %v594
          %v610 = vmul.f32 %v604, %v604
          %v611 = vadd.f32 %v609, %v610
          %v612 = vadd.f32 %v611, 1e-06
          %v613 = vrsqrt.pop %v608
          %v614 = vrsqrt.pop %v612
          %v615 = vmul.f32 %v608, %v613
          %v616 = vmul.f32 %v612, %v614
          %v617 = vmul.f32 %v574, %v594
          %v618 = vmul.f32 %v584, %v604
          %v619 = vadd.f32 %v617, %v618
          %v620 = vmul.f32 %v613, %v614
          %v621 = vmul.f32 %v619, %v620
          %v622 = vand.u32 2147483647, %v621
          %v623 = vsub.f32 1.0, %v622
          %v624 = vmul.f32 %v623, %v616
          %v625 = vmul.f32 %v615, 1.5
          %v626 = vsub.f32 %v625, %v616
          %v627 = vmax.f32 %v626, 0.0
          %v628 = vmul.f32 %v624, 0.5
          %v629 = vmul.f32 %v627, 0.5
          %v630 = vadd.f32 %v628, %v629
          %v632 = vmul.f32 %v630, %v390
          %vm633 = vcmask 122880
          %v634 = vsel %vm633, %v632, 0.0
          %635 = vadd.xlane.f32.xlu0 %v634
          %v636 = vpop.xlane.xlu0 %635
          %v637 = vrot.slane %v636, 4
          %v638 = vadd.f32 %v636, %v637
          %v639 = vrot.slane %v638, 2
          %v640 = vadd.f32 %v638, %v639
          %v641 = vrot.slane %v640, 1
          %v642 = vadd.f32 %v640, %v641
          %s643 = vtos %v642
          %v644 = vstv %s643
          %v645 = vadd.f32 %v560, %v644
          %646 = vst.msk [vmem:[%s290] sm:$0x1] %vm555, %v645
        $region52: #{tpu_custom_call.1} parent=31 // pred_fallthru
          _
        %vm647 = vcmask 123904
        %648 = vst.msk [vmem:[#allocation2] sm:$0x3] %vm647, %v313
        %649 = vst.msk [vmem:[#allocation3] sm:$0x3] %vm647, %v323
        %vm650 = vcmask 130055
        %651 = vst.msk [vmem:[#allocation4 - $0x7] sm:$0x80] %vm650, %v307
        %p652 = scmp.lt.s32.totalorder %s24, 1
        %s653 = scalar_select %p652, %s24, 1
        %s654 = scalar_lea.vmem %s3, %s653
        // Predicated region
        $region53: #{tpu_custom_call.1} parent=31 // pred_check
          %p655 = pneg %p134
        $region54: #{tpu_custom_call.1} parent=31 // pred_check_branch
          %657 = sbr.rel (%p655) target = $region56
        $region55: #{tpu_custom_call.1} parent=31 // pred_region
          _
        $region56: #{tpu_custom_call.1} parent=31 // pred_fallthru
          _
      $region32: #{tpu_custom_call.1} parent=5 // pred_fallthru
        _
      %p658 = scmp.le.s32.totalorder 2, %s15
      // Predicated region
      $region57: #{tpu_custom_call.1} parent=5 // pred_check
        %p659 = pneg %p658
      $region58: #{tpu_custom_call.1} parent=5 // pred_check_branch
        %661 = sbr.rel (%p659) target = $region60
      $region59: #{tpu_custom_call.1} parent=5 // pred_region
        %s662 = ssub.s32 %s15, 2
        // Predicated region
        $region61: #{tpu_custom_call.1} parent=59 // pred_check
          %p663 = pneg %p140
        $region62: #{tpu_custom_call.1} parent=59 // pred_check_branch
          %665 = sbr.rel (%p663) target = $region64
        $region63: #{tpu_custom_call.1} parent=59 // pred_region
          %p666 = scmp.lt.s32.totalorder %s26, 1
          %s667 = scalar_select %p666, %s26, 1
          %s668 = scalar_lea.vmem %s3, %s667
        $region64: #{tpu_custom_call.1} parent=59 // pred_fallthru
          _
      $region60: #{tpu_custom_call.1} parent=5 // pred_fallthru
        _
    $region6: #{tpu_custom_call.1} parent=1 // loop_footer
      %s19 = sadd.s32 1, %s15
    $region7: #{tpu_custom_call.1} parent=1 // loop_footer_branch
      %14 = sbr.rel target = $region3
    $region8: #{tpu_custom_call.1} parent=1 // loop_exit
      _
    %669 = vsyncpa [#allocation6], 1
    %s670 = scalar_lea.sflag [#allocation6], 1
    %671 = vsyncpa %s670, 1
    %672 = vsyncpa [#allocation8], 1
    %s673 = scalar_lea.sflag [#allocation8], 1
    %674 = vsyncpa %s673, 1

</llo_original>
